<compile_context>
chip_gen: v7x
topology: tpu7x:2x2x1
jax: 0.10.0
libtpu: 0.0.40
codegen_flags: <defaults>
</compile_context>

<pallas_src>
import functools
import math

import jax
import jax.numpy as jnp
from jax.experimental import pallas as pl
from jax.experimental.pallas import tpu as pltpu

HP = 128          # lane-padded hidden width (real hidden = 32)
MP = 128          # lane-padded MLP hidden width (real = 64)
_TILE_CHOICES = (512, 256, 128)   # square adjacency tiles for the tiled path

VMEM = pl.BlockSpec(memory_space=pltpu.MemorySpace.VMEM)


# --------------------------- generation-aware VMEM policy ------------------- #

def _query_vmem_cap():
    try:
        cap = int(pltpu.get_tpu_info().vmem_capacity_bytes)
        if cap > 0:
            return cap
    except Exception:
        pass
    return 64 * 2**20           # conservative fallback (v7x-sized)


@functools.lru_cache(maxsize=None)
def _vmem_limit_bytes():
    # ~75% of physical VMEM: ~48 MiB on v7x, ~96 MiB on v5e/v6e.
    return max(32 * 2**20, int(0.75 * _query_vmem_cap()))


@functools.lru_cache(maxsize=None)
def _fused_budget_bytes():
    # Budget for the grid-less fused kernel's working set (leaves compiler headroom).
    return int(0.6 * _vmem_limit_bytes())


def _fused_workset_bytes(n, cin):
    # a (bf16) + in-kernel f32 copy of a + f32 score-product temp + activations.
    return 10 * n * n + n * (2 * cin + 24 * HP) + (1 << 20)


def _params(semantics=None):
    kw = dict(vmem_limit_bytes=_vmem_limit_bytes())
    if semantics is not None:
        kw["dimension_semantics"] = tuple(semantics)
    return pltpu.CompilerParams(**kw)


# --------------------------- fused per-layer kernel ------------------------- #
# Small / mid N: the whole bf16 adjacency is VMEM resident; one HBM read of A serves
# the degree computation, the conv aggregation (MXU) and the SAGPool score aggregation
# (VPU/XLU).  A_hat = D^-1/2 (A+I) D^-1/2 is folded in via d = rsqrt(deg+1) and an
# analytic self-loop term; A_hat is never materialized.
# TODO(synk): overlap the single A HBM->VMEM DMA with the X@W compute via a manual
# make_async_copy (grid=() serializes it today); on v7x this kernel runs on one TC,
# acceptable while HBM-bound.

def _fused_layer_kernel(a_ref, x_ref, w_ref, b_ref, pw_ref, pb_ref, y_ref, s_ref):
    a = a_ref[...]                                        # [N, N] bf16 (0/1, exact)
    af = a.astype(jnp.float32)                            # reused for deg + score agg
    deg = jnp.sum(af, axis=1, keepdims=True) + 1.0        # in-kernel degrees (no HBM pass)
    d = jax.lax.rsqrt(deg)                                # [N, 1] f32

    # conv GCN:  y = relu(d * (A @ (d*XW) + d*XW) + b)
    xw = jnp.dot(x_ref[...].astype(jnp.bfloat16), w_ref[...],
                 preferred_element_type=jnp.float32)      # [N, HP] f32
    xsw = (d * xw).astype(jnp.bfloat16)                   # source-side normalization
    agg = jnp.dot(a, xsw, preferred_element_type=jnp.float32)
    y = jnp.maximum(d * (agg + xsw.astype(jnp.float32)) + b_ref[...], 0.0)
    y_ref[...] = y.astype(y_ref.dtype)                    # bf16 out (halves y HBM traffic)

    # SAGPool scoring GCN -- off the MXU:
    #   z_j   = d_j * (y_j . pw)         (VPU mul + lane reduce)
    #   sagg  = A @ z                    (VPU broadcast-mul + lane reduce, no MXU pass)
    yd = d * y                                            # [N, HP] f32
    pw_row = pw_ref[0:1, :]                               # row 0 holds the real pw
    z_col = jnp.sum(yd * pw_row, axis=1, keepdims=True)   # [N, 1] f32
    z_row = jnp.dot(pw_ref[...], yd.T,
                    preferred_element_type=jnp.float32)[0:1, :]   # [1, N] (tiny matmul)
    sagg = jnp.sum(af * z_row, axis=1, keepdims=True)     # [N, 1] f32
    s_ref[...] = d * (sagg + z_col) + pb_ref[...]


def _fused_layer(a, x, w, b, pw, pb):
    n = a.shape[0]
    cin = x.shape[1]
    flops = 2 * n * cin * HP + 2 * n * n * HP + 3 * n * n + 4 * n * HP + 16 * n * HP
    io = int(a.nbytes + x.nbytes + w.nbytes + b.nbytes + pw.nbytes + pb.nbytes
             + n * HP * 2 + n * 4)
    return pl.pallas_call(
        _fused_layer_kernel,
        out_shape=(jax.ShapeDtypeStruct((n, HP), jnp.bfloat16),   # conv output y
                   jax.ShapeDtypeStruct((n, 1), jnp.float32)),    # SAGPool score
        in_specs=[VMEM] * 6,
        out_specs=(VMEM, VMEM),
        compiler_params=_params(),
        cost_estimate=pl.CostEstimate(flops=int(flops), transcendentals=int(n),
                                      bytes_accessed=io),
    )(a, x, w, b, pw, pb)


# ------------------------------ tiled (large-N) path ------------------------ #
# Grid = (row tiles "parallel", K tiles "arbitrary"); square T x T adjacency tiles
# (T in {512,256,128}), f32 scratch accumulator; xsw / z_row stay VMEM-resident via
# constant-index_map whole-array BlockSpecs and are sliced in-kernel with pl.ds.
# The score aggregation kernel uses no MXU and z travels as N*4 bytes.
# TODO(synk): if the A-tile DMA is still exposed at T=512, add pipeline_mode=pl.Buffered(3)
# on the A BlockSpec.

def _make_conv_tiled_kernel(tile):
    def kernel(a_ref, xsw_ref, d_ref, b_ref, pw_ref, y_ref, z_ref, acc_ref):
        i, k = pl.program_id(0), pl.program_id(1)

        @pl.when(k == 0)
        def _init():
            acc_ref[...] = jnp.zeros_like(acc_ref)

        ks = pl.multiple_of(k * tile, tile)
        xsw_k = xsw_ref[pl.ds(ks, tile), :]               # resident slice (no re-DMA)
        acc_ref[...] += jnp.dot(a_ref[...], xsw_k, preferred_element_type=jnp.float32)

        @pl.when(k == i)                                  # analytic self-loop (square tiles)
        def _self_loop():
            acc_ref[...] += xsw_k.astype(jnp.float32)

        @pl.when(k == pl.num_programs(1) - 1)
        def _finalize():
            isl = pl.multiple_of(i * tile, tile)
            d_i = d_ref[pl.ds(isl, tile), :]
            y = jnp.maximum(d_i * acc_ref[...] + b_ref[...], 0.0)
            y_ref[...] = y.astype(y_ref.dtype)
            yd = d_i * y
            z_ref[...] = jnp.sum(yd * pw_ref[...], axis=1, keepdims=True)   # VPU score proj

    return kernel


def _make_score_tiled_kernel(tile):
    def kernel(a_ref, z_ref, sagg_ref, acc_ref):
        k = pl.program_id(1)

        @pl.when(k == 0)
        def _init():
            acc_ref[...] = jnp.zeros_like(acc_ref)

        ks = pl.multiple_of(k * tile, tile)
        zk = z_ref[:, pl.ds(ks, tile)]                    # [1, T] resident slice
        acc_ref[...] += jnp.sum(a_ref[...].astype(jnp.float32) * zk, axis=1,
                                keepdims=True)            # VPU mul + XLU reduce (no MXU)

        @pl.when(k == pl.num_programs(1) - 1)
        def _finalize():
            sagg_ref[...] = acc_ref[...]

    return kernel


def _tiled_layer(a, x, w, b, pw, pb, tile):
    n = a.shape[0]
    nt = n // tile
    grid = (nt, nt)

    # TODO(synk): fuse this degree pass (and the SAGPool adjacency gather that produced a)
    # into one streamed Pallas gather+rowsum kernel; dtype=f32 keeps the reduce fused in XLA.
    deg = jnp.sum(a, axis=1, dtype=jnp.float32, keepdims=True) + 1.0
    d = jax.lax.rsqrt(deg)
    xw = jnp.dot(x.astype(jnp.bfloat16), w, preferred_element_type=jnp.float32)
    xsw = (d * xw).astype(jnp.bfloat16)                   # [N, HP] bf16, stays VMEM-resident
    pw_row = pw[0:1, :]

    y, z_col = pl.pallas_call(
        _make_conv_tiled_kernel(tile),
        out_shape=(jax.ShapeDtypeStruct((n, HP), jnp.bfloat16),
                   jax.ShapeDtypeStruct((n, 1), jnp.float32)),
        grid_spec=pltpu.PrefetchScalarGridSpec(
            num_scalar_prefetch=0,
            grid=grid,
            in_specs=[
                pl.BlockSpec((tile, tile), lambda i, k: (i, k)),   # A[dst, src] tile
                pl.BlockSpec((n, HP), lambda i, k: (0, 0)),        # xsw (whole, resident)
                pl.BlockSpec((n, 1), lambda i, k: (0, 0)),         # d   (whole, resident)
                pl.BlockSpec((1, HP), lambda i, k: (0, 0)),        # conv bias
                pl.BlockSpec((1, HP), lambda i, k: (0, 0)),        # pool weight row
            ],
            out_specs=(
                pl.BlockSpec((tile, HP), lambda i, k: (i, 0)),
                pl.BlockSpec((tile, 1), lambda i, k: (i, 0)),
            ),
            scratch_shapes=[pltpu.VMEM((tile, HP), jnp.float32)],
        ),
        compiler_params=_params(("parallel", "arbitrary")),
        cost_estimate=pl.CostEstimate(flops=int(2 * n * n * HP + 3 * n * HP),
                                      transcendentals=0,
                                      bytes_accessed=int(a.nbytes + xsw.nbytes
                                                         + n * HP * 2 + n * 8)),
    )(a, xsw, d, b, pw_row)

    z_row = z_col.reshape(1, n)                            # tiny XLA relayout (N*4 bytes)
    sagg = pl.pallas_call(
        _make_score_tiled_kernel(tile),
        out_shape=jax.ShapeDtypeStruct((n, 1), jnp.float32),
        grid_spec=pltpu.PrefetchScalarGridSpec(
            num_scalar_prefetch=0,
            grid=grid,
            in_specs=[
                pl.BlockSpec((tile, tile), lambda i, k: (i, k)),
                pl.BlockSpec((1, n), lambda i, k: (0, 0)),         # z_row (whole, resident)
            ],
            out_specs=pl.BlockSpec((tile, 1), lambda i, k: (i, 0)),
            scratch_shapes=[pltpu.VMEM((tile, 1), jnp.float32)],
        ),
        compiler_params=_params(("parallel", "arbitrary")),
        cost_estimate=pl.CostEstimate(flops=int(3 * n * n), transcendentals=0,
                                      bytes_accessed=int(a.nbytes + n * 8)),
    )(a, z_row)

    score = d * (sagg + z_col) + pb                        # tiny (N,1) elementwise glue
    return y, score


# ----------------------- fused readout + MLP epilogue ----------------------- #
# h_l = cat(global_max_pool, global_add_pool); z = h1+h2+h3; out = MLP([z | hls]).
# The concat is folded into a row-split of the first MLP weight (w1m/w1s/w1h).

def _epilogue_kernel(x1_ref, x2_ref, x3_ref, hls_ref,
                     w1m_ref, w1s_ref, w1h_ref, b1_ref,
                     w2_ref, b2_ref, w3_ref, b3_ref, o_ref):
    x1 = x1_ref[...].astype(jnp.float32)
    x2 = x2_ref[...].astype(jnp.float32)
    x3 = x3_ref[...].astype(jnp.float32)
    mx = jnp.max(x1, axis=1) + jnp.max(x2, axis=1) + jnp.max(x3, axis=1)   # [G, HP]
    sm = jnp.sum(x1, axis=1) + jnp.sum(x2, axis=1) + jnp.sum(x3, axis=1)   # [G, HP] f32
    h = (jnp.dot(mx, w1m_ref[...], preferred_element_type=jnp.float32)
         + jnp.dot(sm, w1s_ref[...], preferred_element_type=jnp.float32)
         + jnp.dot(hls_ref[...], w1h_ref[...], preferred_element_type=jnp.float32)
         + b1_ref[...])
    h = jnp.maximum(h, 0.0)
    h = jnp.maximum(jnp.dot(h, w2_ref[...], preferred_element_type=jnp.float32)
                    + b2_ref[...], 0.0)
    o_ref[...] = jnp.dot(h, w3_ref[...], preferred_element_type=jnp.float32) + b3_ref[...]


def _epilogue(x1, x2, x3, hls, mlp):
    g = x1.shape[0]
    io = int(x1.nbytes + x2.nbytes + x3.nbytes + hls.nbytes
             + sum(v.nbytes for v in mlp.values()) + g * 4)
    return pl.pallas_call(
        _epilogue_kernel,
        out_shape=jax.ShapeDtypeStruct((g, 1), jnp.float32),
        in_specs=[VMEM] * 12,
        out_specs=VMEM,
        compiler_params=_params(),
        cost_estimate=pl.CostEstimate(flops=int(6 * g * HP * MP + 2 * g * MP * MP + 2 * g * MP),
                                      transcendentals=0, bytes_accessed=io),
    )(x1, x2, x3, hls, mlp['w1m'], mlp['w1s'], mlp['w1h'], mlp['b1'],
      mlp['w2'], mlp['b2'], mlp['w3'], mlp['b3'])


# ------------------------------- JAX glue ---------------------------------- #
# TODO(synk): SAGPooling's per-graph top-k (argsort), the node/adjacency gathers and the
# tanh gate are data-dependent and kept in XLA; a PrefetchScalarGridSpec pl.Element
# row-gather kernel emitting a_sub together with its row sums would remove 1-2 A-sized
# HBM passes per layer at very large N.

def sag_pool_select(y, score, a, num_graphs, n_per_graph, pool_ratio):
    k = int(math.ceil(pool_ratio * n_per_graph))
    score_g = score.reshape(num_graphs, n_per_graph)
    idx_local = jnp.argsort(-score_g, axis=1)[:, :k]                        # [G, k]
    offs = (jnp.arange(num_graphs, dtype=jnp.int32) * n_per_graph)[:, None]
    perm = (idx_local.astype(jnp.int32) + offs).reshape(-1)                 # [G*k]
    score_sel = jnp.take_along_axis(score_g, idx_local, axis=1).reshape(-1, 1)
    gate = jnp.tanh(score_sel)                                              # f32 gate
    x_sel = (jnp.take(y, perm, axis=0).astype(jnp.float32) * gate).astype(jnp.bfloat16)
    a_sub = a[perm[:, None], perm[None, :]]                                 # fused gather (bf16)
    return x_sel, a_sub, k


def hiernet_forward(x, edge_index, batch, hls_attr, params,
                    num_graphs, nodes_per_graph, pool_ratio=0.5, force_tiled=False):
    del batch  # graphs are contiguous & equal-sized; grouping handled via reshape
    n = x.shape[0]
    # Dense adjacency A[dst, src] = 1, built directly as bf16 (0/1 exact) -> no f32 N^2 pass.
    a = jnp.zeros((n, n), jnp.bfloat16).at[edge_index[1], edge_index[0]].set(1.0)
    x = x.astype(jnp.float32)

    n_cur = nodes_per_graph
    pooled = []
    num_layers = len(params['conv_w'])
    for layer in range(num_layers):
        n_tot = a.shape[0]
        w, b = params['conv_w'][layer], params['conv_b'][layer]
        pw, pb = params['pool_w'][layer], params['pool_b'][layer]
        tile = max((t for t in _TILE_CHOICES if n_tot % t == 0), default=0)
        fused_ws = _fused_workset_bytes(n_tot, x.shape[1])
        use_tiled = tile > 0 and (force_tiled or fused_ws > _fused_budget_bytes())
        if use_tiled:
            y, score = _tiled_layer(a, x, w, b, pw, pb, tile)
        else:
            y, score = _fused_layer(a, x, w, b, pw, pb)
        x, a, n_cur = sag_pool_select(y, score[:, 0], a, num_graphs, n_cur, pool_ratio)
        pooled.append(x.reshape(num_graphs, n_cur, HP))

    assert len(pooled) == 3  # module computes h_list[0] + h_list[1] + h_list[2]
    return _epilogue(pooled[0], pooled[1], pooled[2],
                     hls_attr.astype(jnp.float32), params['mlp'])


# ------------------------- pure-JAX reference (same math) ------------------- #

def hiernet_reference(x, edge_index, batch, hls_attr, params,
                      num_graphs, nodes_per_graph, pool_ratio=0.5):
    del batch
    n = x.shape[0]
    a = jnp.zeros((n, n), jnp.bfloat16).at[edge_index[1], edge_index[0]].set(1.0)
    x = x.astype(jnp.float32)
    n_cur = nodes_per_graph
    pooled = []
    prec = jax.lax.Precision.HIGHEST
    for layer in range(len(params['conv_w'])):
        w, b = params['conv_w'][layer], params['conv_b'][layer]
        pw, pb = params['pool_w'][layer], params['pool_b'][layer]
        af = a.astype(jnp.float32)
        deg = jnp.sum(af, axis=1, keepdims=True) + 1.0
        d = jax.lax.rsqrt(deg)
        xw = jnp.dot(x.astype(jnp.bfloat16), w, preferred_element_type=jnp.float32)
        xsw = (d * xw).astype(jnp.bfloat16)
        agg = jnp.dot(a, xsw, preferred_element_type=jnp.float32)
        y = jnp.maximum(d * (agg + xsw.astype(jnp.float32)) + b, 0.0)
        yd = d * y
        z = jnp.sum(yd * pw[0:1, :], axis=1, keepdims=True)
        sagg = jnp.dot(af, z, precision=prec)
        score = d * (sagg + z) + pb
        x, a, n_cur = sag_pool_select(y.astype(jnp.bfloat16), score[:, 0], a,
                                      num_graphs, n_cur, pool_ratio)
        pooled.append(x.reshape(num_graphs, n_cur, HP))
    mlp = params['mlp']
    pooled_f = [p_.astype(jnp.float32) for p_ in pooled]
    mx = sum(jnp.max(p_, axis=1) for p_ in pooled_f)
    sm = sum(jnp.sum(p_, axis=1) for p_ in pooled_f)
    h = (jnp.dot(mx, mlp['w1m'], precision=prec)
         + jnp.dot(sm, mlp['w1s'], precision=prec)
         + jnp.dot(hls_attr.astype(jnp.float32), mlp['w1h'], precision=prec) + mlp['b1'])
    h = jnp.maximum(h, 0.0)
    h = jnp.maximum(jnp.dot(h, mlp['w2'], precision=prec) + mlp['b2'], 0.0)
    return jnp.dot(h, mlp['w3'], precision=prec) + mlp['b3']


# ---------------------------- parameter setup ------------------------------ #
# Deterministic synthetic weights, zero-padded to lane-dense shapes.  Padded rows /
# columns are zero, so the padded model is exactly equivalent to the real HierNet.

def init_params(key, in_channels, hidden, hls_dim, num_layers):
    p = {'conv_w': [], 'conv_b': [], 'pool_w': [], 'pool_b': []}
    for i in range(num_layers):
        cin_real = in_channels if i == 0 else hidden
        cin_pad = in_channels if i == 0 else HP
        key, k1, k2 = jax.random.split(key, 3)
        w_real = jax.random.normal(k1, (cin_real, hidden), jnp.float32) / math.sqrt(cin_real)
        w = jnp.zeros((cin_pad, HP), jnp.float32).at[:cin_real, :hidden].set(w_real)
        p['conv_w'].append(w.astype(jnp.bfloat16))        # bf16 MXU operand from the wrapper
        p['conv_b'].append(jnp.zeros((1, HP), jnp.float32))
        pw_real = jax.random.normal(k2, (hidden,), jnp.float32) / math.sqrt(hidden)
        p['pool_w'].append(jnp.zeros((8, HP), jnp.float32).at[0, :hidden].set(pw_real))
        p['pool_b'].append(jnp.zeros((1, 1), jnp.float32))

    d1, d2 = 64, 64
    fan1 = 2 * hidden + hls_dim
    key, k1, k2, k3, k4, k5, k6 = jax.random.split(key, 7)
    w1_real = jax.random.normal(k1, (fan1, d1), jnp.float32) / math.sqrt(fan1)
    w1m = jnp.zeros((HP, MP), jnp.float32).at[:hidden, :d1].set(w1_real[:hidden])
    w1s = jnp.zeros((HP, MP), jnp.float32).at[:hidden, :d1].set(w1_real[hidden:2 * hidden])
    w1h = jnp.zeros((hls_dim, MP), jnp.float32).at[:, :d1].set(w1_real[2 * hidden:])
    b1 = jnp.zeros((1, MP), jnp.float32).at[0, :d1].set(
        0.01 * jax.random.normal(k2, (d1,), jnp.float32))
    w2_real = jax.random.normal(k3, (d1, d2), jnp.float32) / math.sqrt(d1)
    w2 = jnp.zeros((MP, MP), jnp.float32).at[:d1, :d2].set(w2_real)
    b2 = jnp.zeros((1, MP), jnp.float32).at[0, :d2].set(
        0.01 * jax.random.normal(k4, (d2,), jnp.float32))
    w3_real = jax.random.normal(k5, (d2, 1), jnp.float32) / math.sqrt(d2)
    w3 = jnp.zeros((MP, 1), jnp.float32).at[:d2].set(w3_real)
    b3 = 0.01 * jax.random.normal(k6, (1, 1), jnp.float32)
    p['mlp'] = dict(w1m=w1m, w1s=w1s, w1h=w1h, b1=b1, w2=w2, b2=b2, w3=w3, b3=b3)
    return p


# --------------------------------- main ------------------------------------ #

def _ring_graph(num_graphs, nodes_per_graph, kx, kh, in_channels, hls_dim):
    n = num_graphs * nodes_per_graph
    x = jax.random.normal(kx, (n, in_channels), jnp.float32)
    hls = jax.random.normal(kh, (num_graphs, hls_dim), jnp.float32)
    edges = []
    for g in range(num_graphs):
        off = g * nodes_per_graph
        for i in range(nodes_per_graph):
            j = (i + 1) % nodes_per_graph
            edges.append((off + i, off + j))
            edges.append((off + j, off + i))
    edge_index = jnp.asarray(edges, dtype=jnp.int32).T
    batch = jnp.repeat(jnp.arange(num_graphs, dtype=jnp.int32), nodes_per_graph)
    return x, edge_index, batch, hls


def _check(name, out, ref):
    err = float(jnp.max(jnp.abs(out - ref)))
    scale = float(jnp.max(jnp.abs(ref))) + 1e-6
    assert err <= 1e-2 + 2e-2 * scale, f"{name}: max|out-ref| = {err:.3e} (scale {scale:.3e})"


if __name__ == "__main__":
    in_channels, hidden, num_layers, hls_dim = 4, 32, 3, 8
    pool_ratio = 0.5

    key = jax.random.PRNGKey(0)
    key, kp, kx1, kh1, kx2, kh2 = jax.random.split(key, 6)
    params = init_params(kp, in_channels, hidden, hls_dim, num_layers)

    # ---- test 1: small graphs -> fused single-A-read per-layer kernel ----
    G, NPG = 2, 16
    x, edge_index, batch, hls = _ring_graph(G, NPG, kx1, kh1, in_channels, hls_dim)
    out = hiernet_forward(x, edge_index, batch, hls, params, G, NPG, pool_ratio)
    out = jax.block_until_ready(out)
    assert out.shape == (G, 1) and out.dtype == jnp.float32
    ref = hiernet_reference(x, edge_index, batch, hls, params, G, NPG, pool_ratio)
    _check("fused path", out, jax.block_until_ready(ref))

    # ---- test 2: larger graphs -> tiled grid path (square A tiles, parallel rows) ----
    G2, NPG2 = 2, 128    # N = 256 -> tiled (T=256), then tiled (T=128), then fused at N=64
    x2, edge_index2, batch2, hls2 = _ring_graph(G2, NPG2, kx2, kh2, in_channels, hls_dim)
    out2 = hiernet_forward(x2, edge_index2, batch2, hls2, params, G2, NPG2, pool_ratio,
                           force_tiled=True)
    out2 = jax.block_until_ready(out2)
    assert out2.shape == (G2, 1) and out2.dtype == jnp.float32
    ref2 = hiernet_reference(x2, edge_index2, batch2, hls2, params, G2, NPG2, pool_ratio)
    _check("tiled path", out2, jax.block_until_ready(ref2))

    print("KERNEL_OK")
</pallas_src>

<mosaic_0001>
module attributes {stable_mosaic.version = 11 : i64} {
  func.func @_fused_layer_kernel(%arg0: memref<32x32xbf16, #tpu.memory_space<vmem>>, %arg1: memref<32x4xf32, #tpu.memory_space<vmem>>, %arg2: memref<4x128xbf16, #tpu.memory_space<vmem>>, %arg3: memref<1x128xf32, #tpu.memory_space<vmem>>, %arg4: memref<8x128xf32, #tpu.memory_space<vmem>>, %arg5: memref<1x1xf32, #tpu.memory_space<vmem>>, %arg6: memref<32x128xbf16, #tpu.memory_space<vmem>>, %arg7: memref<32x1xf32, #tpu.memory_space<vmem>>) attributes {dimension_semantics = [], scalar_prefetch = 0 : i64, scratch_operands = 0 : i64, tpu.core_type = #tpu.core_type<tc>} {
    %c0 = arith.constant 0 : index
    %c0_0 = arith.constant 0 : index
    %0 = vector.load %arg0[%c0, %c0_0] : memref<32x32xbf16, #tpu.memory_space<vmem>>, vector<32x32xbf16>
    %1 = arith.extf %0 : vector<32x32xbf16> to vector<32x32xf32>
    %cst = arith.constant dense<0.000000e+00> : vector<32xf32>
    %2 = vector.multi_reduction <add>, %1, %cst [1] : vector<32x32xf32> to vector<32xf32>
    %3 = vector.shape_cast %2 : vector<32xf32> to vector<32x1xf32>
    %cst_1 = arith.constant 1.000000e+00 : f32
    %4 = vector.broadcast %cst_1 : f32 to vector<32x1xf32>
    %5 = arith.addf %3, %4 : vector<32x1xf32>
    %6 = math.rsqrt %5 : vector<32x1xf32>
    %c0_2 = arith.constant 0 : index
    %c0_3 = arith.constant 0 : index
    %7 = vector.load %arg1[%c0_2, %c0_3] : memref<32x4xf32, #tpu.memory_space<vmem>>, vector<32x4xf32>
    %8 = arith.truncf %7 : vector<32x4xf32> to vector<32x4xbf16>
    %c0_4 = arith.constant 0 : index
    %c0_5 = arith.constant 0 : index
    %9 = vector.load %arg2[%c0_4, %c0_5] : memref<4x128xbf16, #tpu.memory_space<vmem>>, vector<4x128xbf16>
    %cst_6 = arith.constant dense<0.000000e+00> : vector<32x128xf32>
    %10 = tpu.matmul %8, %9, %cst_6 {dimension_numbers = #tpu.dot_dimension_numbers<[1], [0], [0], [1], [0, 0, 1, 1], [], []>} : vector<32x4xbf16>, vector<4x128xbf16>, vector<32x128xf32> -> vector<32x128xf32>
    %11 = vector.broadcast %6 : vector<32x1xf32> to vector<32x128xf32>
    %12 = arith.mulf %11, %10 : vector<32x128xf32>
    %13 = arith.truncf %12 : vector<32x128xf32> to vector<32x128xbf16>
    %cst_7 = arith.constant dense<0.000000e+00> : vector<32x128xf32>
    %14 = tpu.matmul %0, %13, %cst_7 {dimension_numbers = #tpu.dot_dimension_numbers<[1], [0], [0], [1], [0, 0, 1, 1], [], []>} : vector<32x32xbf16>, vector<32x128xbf16>, vector<32x128xf32> -> vector<32x128xf32>
    %15 = arith.extf %13 : vector<32x128xbf16> to vector<32x128xf32>
    %16 = arith.addf %14, %15 : vector<32x128xf32>
    %17 = vector.broadcast %6 : vector<32x1xf32> to vector<32x128xf32>
    %18 = arith.mulf %17, %16 : vector<32x128xf32>
    %c0_8 = arith.constant 0 : index
    %c0_9 = arith.constant 0 : index
    %19 = vector.load %arg3[%c0_8, %c0_9] : memref<1x128xf32, #tpu.memory_space<vmem>>, vector<1x128xf32>
    %20 = vector.broadcast %19 : vector<1x128xf32> to vector<32x128xf32>
    %21 = arith.addf %18, %20 : vector<32x128xf32>
    %cst_10 = arith.constant 0.000000e+00 : f32
    %22 = vector.broadcast %cst_10 : f32 to vector<32x128xf32>
    %23 = arith.maximumf %21, %22 : vector<32x128xf32>
    %24 = arith.truncf %23 : vector<32x128xf32> to vector<32x128xbf16>
    %c0_11 = arith.constant 0 : index
    %c0_12 = arith.constant 0 : index
    %25 = vector.load %arg6[%c0_11, %c0_12] : memref<32x128xbf16, #tpu.memory_space<vmem>>, vector<32x128xbf16>
    tpu.vector_store %arg6[%c0_11, %c0_12], %24 {strides = array<i32>} : memref<32x128xbf16, #tpu.memory_space<vmem>>, vector<32x128xbf16>,
    %26 = vector.broadcast %6 : vector<32x1xf32> to vector<32x128xf32>
    %27 = arith.mulf %26, %23 : vector<32x128xf32>
    %c0_13 = arith.constant 0 : index
    %c0_14 = arith.constant 0 : index
    %28 = vector.load %arg4[%c0_13, %c0_14] : memref<8x128xf32, #tpu.memory_space<vmem>>, vector<1x128xf32>
    %29 = vector.broadcast %28 : vector<1x128xf32> to vector<32x128xf32>
    %30 = arith.mulf %27, %29 : vector<32x128xf32>
    %cst_15 = arith.constant dense<0.000000e+00> : vector<32xf32>
    %31 = vector.multi_reduction <add>, %30, %cst_15 [1] : vector<32x128xf32> to vector<32xf32>
    %32 = vector.shape_cast %31 : vector<32xf32> to vector<32x1xf32>
    %c0_16 = arith.constant 0 : index
    %c0_17 = arith.constant 0 : index
    %33 = vector.load %arg4[%c0_16, %c0_17] : memref<8x128xf32, #tpu.memory_space<vmem>>, vector<8x128xf32>
    %34 = tpu.transpose %27, [1, 0] : vector<32x128xf32> -> vector<128x32xf32>
    %cst_18 = arith.constant dense<0.000000e+00> : vector<8x32xf32>
    %35 = tpu.matmul %33, %34, %cst_18 {dimension_numbers = #tpu.dot_dimension_numbers<[1], [0], [0], [1], [0, 0, 1, 1], [], []>} : vector<8x128xf32>, vector<128x32xf32>, vector<8x32xf32> -> vector<8x32xf32>
    %36 = vector.extract_strided_slice %35 {offsets = [0, 0], sizes = [1, 32], strides = [1, 1]} : vector<8x32xf32> to vector<1x32xf32>
    %37 = vector.broadcast %36 : vector<1x32xf32> to vector<32x32xf32>
    %38 = arith.mulf %1, %37 : vector<32x32xf32>
    %cst_19 = arith.constant dense<0.000000e+00> : vector<32xf32>
    %39 = vector.multi_reduction <add>, %38, %cst_19 [1] : vector<32x32xf32> to vector<32xf32>
    %40 = vector.shape_cast %39 : vector<32xf32> to vector<32x1xf32>
    %41 = arith.addf %40, %32 : vector<32x1xf32>
    %42 = arith.mulf %6, %41 : vector<32x1xf32>
    %c0_20 = arith.constant 0 : index
    %c0_21 = arith.constant 0 : index
    %43 = vector.load %arg5[%c0_20, %c0_21] : memref<1x1xf32, #tpu.memory_space<vmem>>, vector<1x1xf32>
    %44 = vector.broadcast %43 : vector<1x1xf32> to vector<32x1xf32>
    %45 = arith.addf %42, %44 : vector<32x1xf32>
    %c0_22 = arith.constant 0 : index
    %c0_23 = arith.constant 0 : index
    %46 = vector.load %arg7[%c0_22, %c0_23] : memref<32x1xf32, #tpu.memory_space<vmem>>, vector<32x1xf32>
    tpu.vector_store %arg7[%c0_22, %c0_23], %45 {strides = array<i32>} : memref<32x1xf32, #tpu.memory_space<vmem>>, vector<32x1xf32>,
    return
  }
}

</mosaic_0001>

<llo_original>
// kernel: tpu_custom_call.1
$region0: #{tpu_custom_call.1}
  #allocation0 [shape = 'u32[]', space=smem, size = 0x4, offset = 0x4, fixed_abs, tag = 'smem constant byte address 0x4 - core index']
  #allocation1 [shape = 'u32[144,128]{1,0:T(1,128)}', space=vmem, size = 0x12000, scoped, tag = 'internal scratch']
  #allocation2 [shape = 'f32[1,1]{1,0:T(1,128)S(1)}', space=vmem, size = 0x200, scoped, tag = 'scoped memory for tpu_custom_call.1']
  %s0 = inlined_call_operand.vmem [shape: bf16[32,32], index: 0, kind: input, shape index: {}]
  %s1 = inlined_call_operand.vmem [shape: f32[32,4], index: 1, kind: input, shape index: {}]
  %s2 = inlined_call_operand.vmem [shape: bf16[4,128], index: 2, kind: input, shape index: {}]
  %s3 = inlined_call_operand.vmem [shape: f32[1,128], index: 3, kind: input, shape index: {}]
  %s4 = inlined_call_operand.vmem [shape: f32[8,128], index: 4, kind: input, shape index: {}]
  %s5 = inlined_call_operand.<no memory space> [shape: f32[1,1], index: 5, kind: input, shape index: {}]
  %s6 = inlined_call_operand.hbm [shape: bf16[32,128], index: 6, kind: output, shape index: {0}]
  %s7 = inlined_call_operand.vmem [shape: f32[32,1], index: 7, kind: output, shape index: {1}]
  %8 = xla_tuple %s6, %s7
  %s9 = sld [smem:[#allocation0]]
  $region42: #{tpu_custom_call.1} parent=0
    _
  %s11 = ssub.s32 1, %s9
  %s12 = scalar_select 0, %s11, %s9
  %v13 = vstv %s5
  %14 = vst [vmem:[#allocation2] sm:$0x1] %v13
  $region1: #{tpu_custom_call.1} parent=0
    #allocation3 [shape = 'u8[8192]{0}', space=vmem, size = 0x2000, scoped, tag = 'output window, operand 0, single buffered']
    #allocation4 [shape = 's32[1]{0}', space=sflag, size = 0x4, scoped, tag = 'scoped memory for tpu_custom_call.1']
    %15 = vsyncpa [#allocation4], 0
    // Predicated region
    $region2: #{tpu_custom_call.1} parent=1 // pred_check
      _
    $region3: #{tpu_custom_call.1} parent=1 // pred_check_branch
      %17 = sbr.rel (0) target = $region5
    $region4: #{tpu_custom_call.1} parent=1 // pred_region
      _
    $region5: #{tpu_custom_call.1} parent=1 // pred_fallthru
      _
    // Predicated region
    $region6: #{tpu_custom_call.1} parent=1 // pred_check
      _
    $region7: #{tpu_custom_call.1} parent=1 // pred_check_branch
      %19 = sbr.rel (0) target = $region9
    $region8: #{tpu_custom_call.1} parent=1 // pred_region
      _
    $region9: #{tpu_custom_call.1} parent=1 // pred_fallthru
      _
    // Predicated region
    $region10: #{tpu_custom_call.1} parent=1 // pred_check
      _
    $region11: #{tpu_custom_call.1} parent=1 // pred_check_branch
      %21 = sbr.rel (0) target = $region13
    $region12: #{tpu_custom_call.1} parent=1 // pred_region
      _
    $region13: #{tpu_custom_call.1} parent=1 // pred_fallthru
      _
    // Predicated region
    $region14: #{tpu_custom_call.1} parent=1 // pred_check
      _
    $region15: #{tpu_custom_call.1} parent=1 // pred_check_branch
      %23 = sbr.rel (0) target = $region17
    $region16: #{tpu_custom_call.1} parent=1 // pred_region
      _
    $region17: #{tpu_custom_call.1} parent=1 // pred_fallthru
      _
    // Predicated region
    $region18: #{tpu_custom_call.1} parent=1 // pred_check
      _
    $region19: #{tpu_custom_call.1} parent=1 // pred_check_branch
      %25 = sbr.rel (0) target = $region21
    $region20: #{tpu_custom_call.1} parent=1 // pred_region
      _
    $region21: #{tpu_custom_call.1} parent=1 // pred_fallthru
      _
    // Predicated region
    $region22: #{tpu_custom_call.1} parent=1 // pred_check
      _
    $region23: #{tpu_custom_call.1} parent=1 // pred_check_branch
      %27 = sbr.rel (0) target = $region25
    $region24: #{tpu_custom_call.1} parent=1 // pred_region
      _
    $region25: #{tpu_custom_call.1} parent=1 // pred_fallthru
      _
    %v29 = vld [vmem:[%s0] sm:$0xf]
    %v30 = vld [vmem:[%s0 + $0x4] sm:$0xf]
    %v31 = vld [vmem:[%s0 + $0x8] sm:$0xf]
    %v32 = vld [vmem:[%s0 + $0xc] sm:$0xf]
    %v33 = vunpack.c.l.bf16 %v29
    %v34 = vunpack.c.l.bf16 %v30
    %v35 = vunpack.c.l.bf16 %v31
    %v36 = vunpack.c.l.bf16 %v32
    %vm37 = vcmask 261120
    %v38 = vsel %vm37, %v33, 0.0
    %39 = vadd.xlane.f32.xlu0 %v38
    %v40 = vpop.xlane.xlu0 %39
    %v41 = vsel %vm37, %v34, 0.0
    %42 = vadd.xlane.f32.xlu0 %v41
    %v43 = vpop.xlane.xlu0 %42
    %v44 = vsel %vm37, %v35, 0.0
    %45 = vadd.xlane.f32.xlu0 %v44
    %v46 = vpop.xlane.xlu0 %45
    %v47 = vsel %vm37, %v36, 0.0
    %48 = vadd.xlane.f32.xlu0 %v47
    %v49 = vpop.xlane.xlu0 %48
    %v50 = vadd.f32 %v40, 1.0
    %v51 = vadd.f32 %v43, 1.0
    %v52 = vadd.f32 %v46, 1.0
    %v53 = vadd.f32 %v49, 1.0
    %v54 = vrsqrt.pop %v50
    %v55 = vrsqrt.pop %v51
    %v56 = vrsqrt.pop %v52
    %v57 = vrsqrt.pop %v53
    %v58 = vld [vmem:[%s1] sm:$0xff]
    %v59 = vld [vmem:[%s1 + $0x8] sm:$0xff]
    %v60 = vld [vmem:[%s1 + $0x10] sm:$0xff]
    %v61 = vld [vmem:[%s1 + $0x18] sm:$0xff]
    %v62 = vpack.c.bf16 %v59, %v58
    %v63 = vpack.c.bf16 %v61, %v60
    %v64 = vld [vmem:[%s2] sm:$0x3]
    %vm65 = vcmask 31744
    %v67 = vsel %vm65, %v62, 0
    %v70 = vsel %vm65, %v63, 0
    %vm72 = vcmask 1041408
    %v74 = vsel %vm72, %v64, 0
    %76 = vmatprep.subr.bf16.mxu0 0
    %77 = vmatpush1.bf16.msra.mxu0 %v74
    %78 = vmatprep.subr.bf16.mxu0 0
    %79 = vmatpush1.bf16.msra.mxu0 0
    %80 = vmatprep.subr.bf16.mxu0 0
    %81 = vmatpush1.bf16.msra.mxu0 0
    %82 = vmatprep.subr.bf16.mxu0 0
    %83 = vmatpush1.bf16.msra.mxu0 0
    %84 = vmatprep.subr.bf16.mxu0 0
    %85 = vmatpush1.bf16.msra.mxu0 0
    %86 = vmatprep.subr.bf16.mxu0 0
    %87 = vmatpush1.bf16.msra.mxu0 0
    %88 = vmatprep.subr.bf16.mxu0 0
    %89 = vmatpush1.bf16.msra.mxu0 0
    %90 = vmatprep.subr.bf16.mxu0 0
    %91 = vmatpush1.bf16.msra.mxu0 0
    %92 = vmatprep.subr.bf16.mxu0 0
    %93 = vmatpush1.bf16.msra.mxu0 0
    %94 = vmatprep.subr.bf16.mxu0 0
    %95 = vmatpush1.bf16.msra.mxu0 0
    %96 = vmatprep.subr.bf16.mxu0 0
    %97 = vmatpush1.bf16.msra.mxu0 0
    %98 = vmatprep.subr.bf16.mxu0 0
    %99 = vmatpush1.bf16.msra.mxu0 0
    %100 = vmatprep.subr.bf16.mxu0 0
    %101 = vmatpush1.bf16.msra.mxu0 0
    %102 = vmatprep.subr.bf16.mxu0 0
    %103 = vmatpush1.bf16.msra.mxu0 0
    %104 = vmatprep.subr.bf16.mxu0 0
    %105 = vmatpush1.bf16.msra.mxu0 0
    %106 = vmatprep.subr.bf16.mxu0 0
    %107 = vmatpush1.bf16.msra.mxu0 0
    %108 = vmatprep.mubr.bf16.mxu0 0
    %109 = vmatmul.mubr.bf16.gmra.mrb[0].mxu0 %v67
    %v110 = vpop.f32.mrb[0].mxu0
    %v111 = vadd.f32 0.0, %v110
    %v112 = vpop.f32.mrb[0].mxu0
    %v113 = vpop.f32.mrb[0].mxu0
    %v114 = vadd.f32 0.0, %v113
    %v115 = vpop.f32.mrb[0].mxu0
    %116 = vmatprep.mubr.bf16.mxu0 0
    %117 = vmatmul.mubr.bf16.gmra.mrb[0].mxu0 %v70
    %v118 = vpop.f32.mrb[0].mxu0
    %v119 = vadd.f32 0.0, %v118
    %v120 = vpop.f32.mrb[0].mxu0
    %v121 = vpop.f32.mrb[0].mxu0
    %v122 = vadd.f32 0.0, %v121
    %v123 = vpop.f32.mrb[0].mxu0
    %124 = vdwg.mxu0
    %v125 = vmul.f32 %v54, %v111
    %v126 = vmul.f32 %v55, %v114
    %v127 = vmul.f32 %v56, %v119
    %v128 = vmul.f32 %v57, %v122
    %v129 = vpack.c.bf16 %v126, %v125
    %v130 = vpack.c.bf16 %v128, %v127
    %v131 = vunpack.c.l.bf16 %v129
    %v132 = vunpack.c.h.bf16 %v129
    %v133 = vunpack.c.l.bf16 %v130
    %v134 = vunpack.c.h.bf16 %v130
    %v139 = vunpack.c.l.b16 %v29
    %v140 = vunpack.c.l.b16 %v30
    %v141 = vunpack.c.l.b16 %v31
    %v142 = vunpack.c.l.b16 %v32
    %v143 = vpack.c.b16 %v140, %v139
    %v144 = vpack.c.b16 %v142, %v141
    %v146 = vsel %vm37, %v143, 0
    %v149 = vsel %vm37, %v144, 0
    %151 = vmatprep.subr.bf16.mxu0 0
    %152 = vmatpush1.bf16.msra.mxu0 %v129
    %153 = vmatprep.subr.bf16.mxu0 0
    %154 = vmatpush1.bf16.msra.mxu0 %v130
    %155 = vmatprep.subr.bf16.mxu0 0
    %156 = vmatpush1.bf16.msra.mxu0 0
    %157 = vmatprep.subr.bf16.mxu0 0
    %158 = vmatpush1.bf16.msra.mxu0 0
    %159 = vmatprep.subr.bf16.mxu0 0
    %160 = vmatpush1.bf16.msra.mxu0 0
    %161 = vmatprep.subr.bf16.mxu0 0
    %162 = vmatpush1.bf16.msra.mxu0 0
    %163 = vmatprep.subr.bf16.mxu0 0
    %164 = vmatpush1.bf16.msra.mxu0 0
    %165 = vmatprep.subr.bf16.mxu0 0
    %166 = vmatpush1.bf16.msra.mxu0 0
    %167 = vmatprep.subr.bf16.mxu0 0
    %168 = vmatpush1.bf16.msra.mxu0 0
    %169 = vmatprep.subr.bf16.mxu0 0
    %170 = vmatpush1.bf16.msra.mxu0 0
    %171 = vmatprep.subr.bf16.mxu0 0
    %172 = vmatpush1.bf16.msra.mxu0 0
    %173 = vmatprep.subr.bf16.mxu0 0
    %174 = vmatpush1.bf16.msra.mxu0 0
    %175 = vmatprep.subr.bf16.mxu0 0
    %176 = vmatpush1.bf16.msra.mxu0 0
    %177 = vmatprep.subr.bf16.mxu0 0
    %178 = vmatpush1.bf16.msra.mxu0 0
    %179 = vmatprep.subr.bf16.mxu0 0
    %180 = vmatpush1.bf16.msra.mxu0 0
    %181 = vmatprep.subr.bf16.mxu0 0
    %182 = vmatpush1.bf16.msra.mxu0 0
    %183 = vmatprep.mubr.bf16.mxu0 0
    %184 = vmatmul.mubr.bf16.gmra.mrb[0].mxu0 %v146
    %v185 = vpop.f32.mrb[0].mxu0
    %v186 = vadd.f32 %v131, %v185
    %v187 = vpop.f32.mrb[0].mxu0
    %v188 = vpop.f32.mrb[0].mxu0
    %v189 = vadd.f32 %v132, %v188
    %v190 = vpop.f32.mrb[0].mxu0
    %191 = vmatprep.mubr.bf16.mxu0 0
    %192 = vmatmul.mubr.bf16.gmra.mrb[0].mxu0 %v149
    %v193 = vpop.f32.mrb[0].mxu0
    %v194 = vadd.f32 %v133, %v193
    %v195 = vpop.f32.mrb[0].mxu0
    %v196 = vpop.f32.mrb[0].mxu0
    %v197 = vadd.f32 %v134, %v196
    %v198 = vpop.f32.mrb[0].mxu0
    %199 = vdwg.mxu0
    %v200 = vmul.f32 %v54, %v186
    %v201 = vmul.f32 %v55, %v189
    %v202 = vmul.f32 %v56, %v194
    %v203 = vmul.f32 %v57, %v197
    %v204 = vld [vmem:[%s3] sm:$0x1]
    %v206 = vlaneseq
    %v207 = vshrl.u32 %v206, 7
    %v208 = vsub.s32 0, %v207
    %v209 = vrot.slane %v204, %v208
    %v211 = vadd.f32 %v200, %v209
    %v212 = vadd.f32 %v201, %v209
    %v213 = vadd.f32 %v202, %v209
    %v214 = vadd.f32 %v203, %v209
    %v215 = vmax.f32 %v211, 0.0
    %v216 = vmax.f32 %v212, 0.0
    %v217 = vmax.f32 %v213, 0.0
    %v218 = vmax.f32 %v214, 0.0
    %v219 = vpack.c.bf16 %v216, %v215
    %v220 = vpack.c.bf16 %v218, %v217
    %v223 = vunpack.c.l.b16 %v219
    %v224 = vunpack.c.h.b16 %v219
    %v225 = vunpack.c.l.b16 %v220
    %v226 = vunpack.c.h.b16 %v220
    %v227 = vpack.c.b16 %v223, %v223
    %v228 = vpack.c.b16 %v224, %v224
    %v229 = vpack.c.b16 %v225, %v225
    %v230 = vpack.c.b16 %v226, %v226
    %235 = vst [vmem:[#allocation3] sm:$0xf] %v227
    %236 = vst [vmem:[#allocation3 + $0x4] sm:$0xf] %v228
    %237 = vst [vmem:[#allocation3 + $0x8] sm:$0xf] %v229
    %238 = vst [vmem:[#allocation3 + $0xc] sm:$0xf] %v230
    %v239 = vmul.f32 %v54, %v215
    %v240 = vmul.f32 %v55, %v216
    %v241 = vmul.f32 %v56, %v217
    %v242 = vmul.f32 %v57, %v218
    %v243 = vld [vmem:[%s4] sm:$0x1]
    %v244 = vlaneseq
    %v245 = vshrl.u32 %v244, 7
    %v246 = vsub.s32 0, %v245
    %v247 = vrot.slane %v243, %v246
    %v248 = vmul.f32 %v239, %v247
    %v249 = vmul.f32 %v240, %v247
    %v250 = vmul.f32 %v241, %v247
    %v251 = vmul.f32 %v242, %v247
    %252 = vadd.xlane.f32.xlu0 %v248
    %v253 = vpop.xlane.xlu0 %252
    %254 = vadd.xlane.f32.xlu0 %v249
    %v255 = vpop.xlane.xlu0 %254
    %256 = vadd.xlane.f32.xlu0 %v250
    %v257 = vpop.xlane.xlu0 %256
    %258 = vadd.xlane.f32.xlu0 %v251
    %v259 = vpop.xlane.xlu0 %258
    %v260 = vld [vmem:[%s4] sm:$0xff]
    %261 = vmatprep.subr.mxu0 0.0
    %262 = vmatpush1.xpose.msra.mxu0 %v239
    %263 = vmatprep.subr.mxu0 0.0
    %264 = vmatpush1.xpose.msra.mxu0 %v240
    %265 = vmatprep.subr.mxu0 0.0
    %266 = vmatpush1.xpose.msra.mxu0 %v241
    %267 = vmatprep.subr.mxu0 0.0
    %268 = vmatpush1.xpose.msra.mxu0 %v242
    %269 = vmatprep.subr.mxu0 0.0
    %270 = vmatpush1.xpose.msra.mxu0 0.0
    %271 = vmatprep.subr.mxu0 0.0
    %272 = vmatpush1.xpose.msra.mxu0 0.0
    %273 = vmatprep.subr.mxu0 0.0
    %274 = vmatpush1.xpose.msra.mxu0 0.0
    %275 = vmatprep.subr.mxu0 0.0
    %276 = vmatpush1.xpose.msra.mxu0 0.0
    %277 = vmatprep.subr.mxu0 0.0
    %278 = vmatpush1.xpose.msra.mxu0 0.0
    %279 = vmatprep.subr.mxu0 0.0
    %280 = vmatpush1.xpose.msra.mxu0 0.0
    %281 = vmatprep.subr.mxu0 0.0
    %282 = vmatpush1.xpose.msra.mxu0 0.0
    %283 = vmatprep.subr.mxu0 0.0
    %284 = vmatpush1.xpose.msra.mxu0 0.0
    %285 = vmatprep.subr.mxu0 0.0
    %286 = vmatpush1.xpose.msra.mxu0 0.0
    %287 = vmatprep.subr.mxu0 0.0
    %288 = vmatpush1.xpose.msra.mxu0 0.0
    %289 = vmatprep.subr.mxu0 0.0
    %290 = vmatpush1.xpose.msra.mxu0 0.0
    %291 = vmatprep.subr.mxu0 0.0
    %292 = vmatpush1.xpose.msra.mxu0 0.0
    %293 = vmatprep.subr.mxu0 0.0
    %294 = vmatpush1.xpose.msra.mxu0 0.0
    %295 = vmatprep.subr.mxu0 0.0
    %296 = vmatpush1.xpose.msra.mxu0 0.0
    %297 = vmatprep.subr.mxu0 0.0
    %298 = vmatpush1.xpose.msra.mxu0 0.0
    %299 = vmatprep.subr.mxu0 0.0
    %300 = vmatpush1.xpose.msra.mxu0 0.0
    %301 = vmatprep.subr.mxu0 0.0
    %302 = vmatpush1.xpose.msra.mxu0 0.0
    %303 = vmatprep.subr.mxu0 0.0
    %304 = vmatpush1.xpose.msra.mxu0 0.0
    %305 = vmatprep.subr.mxu0 0.0
    %306 = vmatpush1.xpose.msra.mxu0 0.0
    %307 = vmatprep.subr.mxu0 0.0
    %308 = vmatpush1.xpose.msra.mxu0 0.0
    %309 = vmatprep.subr.mxu0 0.0
    %310 = vmatpush1.xpose.msra.mxu0 0.0
    %311 = vmatprep.subr.mxu0 0.0
    %312 = vmatpush1.xpose.msra.mxu0 0.0
    %313 = vmatprep.subr.mxu0 0.0
    %314 = vmatpush1.xpose.msra.mxu0 0.0
    %315 = vmatprep.subr.mxu0 0.0
    %316 = vmatpush1.xpose.msra.mxu0 0.0
    %317 = vmatprep.subr.mxu0 0.0
    %318 = vmatpush1.xpose.msra.mxu0 0.0
    %319 = vmatprep.subr.mxu0 0.0
    %320 = vmatpush1.xpose.msra.mxu0 0.0
    %321 = vmatprep.subr.mxu0 0.0
    %322 = vmatpush1.xpose.msra.mxu0 0.0
    %323 = vmatprep.subr.mxu0 0.0
    %324 = vmatpush1.xpose.msra.mxu0 0.0
    %325 = vmatprep.mubr.f32.mxu0 0.0
    %326 = vmatmul.mubr.f32.gmra.mrb[0].mxu0 %v260
    %v327 = vpop.f32.mrb[0].mxu0
    %v328 = vadd.f32 0.0, %v327
    %v329 = vpop.f32.mrb[0].mxu0
    %330 = vdwg.mxu0
    %v331 = vlaneseq
    %v332 = vshrl.u32 %v331, 7
    %v333 = vsub.s32 0, %v332
    %v334 = vrot.slane %v328, %v333
    %v335 = vmul.f32 %v33, %v334
    %v336 = vmul.f32 %v34, %v334
    %v337 = vmul.f32 %v35, %v334
    %v338 = vmul.f32 %v36, %v334
    %v339 = vsel %vm37, %v335, 0.0
    %340 = vadd.xlane.f32.xlu0 %v339
    %v341 = vpop.xlane.xlu0 %340
    %v342 = vsel %vm37, %v336, 0.0
    %343 = vadd.xlane.f32.xlu0 %v342
    %v344 = vpop.xlane.xlu0 %343
    %v345 = vsel %vm37, %v337, 0.0
    %346 = vadd.xlane.f32.xlu0 %v345
    %v347 = vpop.xlane.xlu0 %346
    %v348 = vsel %vm37, %v338, 0.0
    %349 = vadd.xlane.f32.xlu0 %v348
    %v350 = vpop.xlane.xlu0 %349
    %v351 = vadd.f32 %v341, %v253
    %v352 = vadd.f32 %v344, %v255
    %v353 = vadd.f32 %v347, %v257
    %v354 = vadd.f32 %v350, %v259
    %v355 = vmul.f32 %v54, %v351
    %v356 = vmul.f32 %v55, %v352
    %v357 = vmul.f32 %v56, %v353
    %v358 = vmul.f32 %v57, %v354
    %v359 = vld [vmem:[#allocation2] sm:$0x1]
    %v361 = vlaneseq
    %v362 = vshrl.u32 %v361, 7
    %v363 = vsub.s32 0, %v362
    %v364 = vrot.slane %v359, %v363
    %v366 = vadd.f32 %v355, %v364
    %v367 = vadd.f32 %v356, %v364
    %v368 = vadd.f32 %v357, %v364
    %v369 = vadd.f32 %v358, %v364
    %vm370 = vcmask 7168
    %371 = vst.msk [vmem:[%s7] sm:$0xff] %vm370, %v366
    %372 = vst.msk [vmem:[%s7 + $0x8] sm:$0xff] %vm370, %v367
    %373 = vst.msk [vmem:[%s7 + $0x10] sm:$0xff] %vm370, %v368
    %374 = vst.msk [vmem:[%s7 + $0x18] sm:$0xff] %vm370, %v369
    // Predicated region
    $region26: #{tpu_custom_call.1} parent=1 // pred_check
      _
    $region27: #{tpu_custom_call.1} parent=1 // pred_check_branch
      %376 = sbr.rel (0) target = $region29
    $region28: #{tpu_custom_call.1} parent=1 // pred_region
      %s378 = ssub.s32 256, 256
      %379 = vsyncadd [#allocation4], %s378
      %s380 = sshll.u32 [#allocation3], 4
      %s381 = int_to_ptr.vmem [resolvable:$true] %s380
      %386 = dma.vmem_to_hbm [thread:$0]  %s381, 256, %s6, [#allocation4], 64, 64, 4
    $region29: #{tpu_custom_call.1} parent=1 // pred_fallthru
      _
    // Predicated region
    $region30: #{tpu_custom_call.1} parent=1 // pred_check
      _
    $region31: #{tpu_custom_call.1} parent=1 // pred_check_branch
      %388 = sbr.rel (0) target = $region33
    $region32: #{tpu_custom_call.1} parent=1 // pred_region
      _
    $region33: #{tpu_custom_call.1} parent=1 // pred_fallthru
      _
    // Predicated region
    $region34: #{tpu_custom_call.1} parent=1 // pred_check
      _
    $region35: #{tpu_custom_call.1} parent=1 // pred_check_branch
      %390 = sbr.rel (0) target = $region37
    $region36: #{tpu_custom_call.1} parent=1 // pred_region
      %391 = dma.done [#allocation4], 256
    $region37: #{tpu_custom_call.1} parent=1 // pred_fallthru
      _
    // Predicated region
    $region38: #{tpu_custom_call.1} parent=1 // pred_check
      _
    $region39: #{tpu_custom_call.1} parent=1 // pred_check_branch
      %393 = sbr.rel (0) target = $region41
    $region40: #{tpu_custom_call.1} parent=1 // pred_region
      _
    $region41: #{tpu_custom_call.1} parent=1 // pred_fallthru
      _
    %394 = vsyncpa [#allocation4], 1

</llo_original>
